<compile_context>
chip_gen: v5e
topology: v5e:2x2
jax: 0.10.0
libtpu: 0.0.40
codegen_flags: <defaults>
</compile_context>

<pallas_src>
import jax
import jax.numpy as jnp
from jax import lax
from jax.experimental import pallas as pl
from jax.experimental.pallas import tpu as pltpu

D_in, H1, H2, H3, D_out = 10, 9, 9, 9, 1

H_PAD = 16          # hidden feature rows padded 9 -> 16 (sublane aligned)
ONE_ROW = H_PAD - 1  # spare padded row pinned to 1.0 to carry folded biases


def mlp_kernel(x_ref, w1_ref, b1_ref, w2_ref, w3_ref, w4_ref, o_ref):
    # x_ref: (tb, D_in); w1: (H_PAD, D_in); b1: (H_PAD, 1) with b1[ONE_ROW] = 1.0;
    # w2/w3: (H_PAD, H_PAD) with folded biases in column ONE_ROW and a 1.0 pass-through
    # at [ONE_ROW, ONE_ROW]; w4: (1, H_PAD) with b4 folded into column ONE_ROW.
    x = x_ref[...]
    # Layer 1: contract the feature dim of both operands -> (H_PAD, tb) batch-on-lanes.
    h = lax.dot_general(w1_ref[...], x, (((1,), (1,)), ((), ())),
                        preferred_element_type=jnp.float32)
    h = jnp.maximum(h + b1_ref[...], 0.0)          # establishes the ones row too
    h = jnp.maximum(jnp.dot(w2_ref[...], h, preferred_element_type=jnp.float32), 0.0)
    h = jnp.maximum(jnp.dot(w3_ref[...], h, preferred_element_type=jnp.float32), 0.0)
    y = jnp.dot(w4_ref[...], h, preferred_element_type=jnp.float32)
    o_ref[...] = y.astype(o_ref.dtype)             # (1, tb): lane-dense store


def _round_up(n, m):
    return ((n + m - 1) // m) * m


def mymodel_forward(x, params, tb=8192):
    """x: (B, D_in) float32 (PyTorch layout). params: output of prepare_params()."""
    w1p, b1p, w2p, w3p, w4p = params
    B = x.shape[0]

    # Keep >= 2 grid steps (v7x has 2 TensorCores sharing HBM bandwidth) and a
    # 128-lane-aligned tile.
    tb = max(128, min(tb, _round_up(pl.cdiv(B, 2), 128)))
    nb = pl.cdiv(B, tb)
    B_pad = nb * tb
    x_pad = x if B_pad == B else jnp.pad(x, ((0, B_pad - B), (0, 0)))

    def const_spec(a):  # tiny weights/biases: one block, VMEM-resident across steps
        return pl.BlockSpec(a.shape, lambda i: (0, 0))

    flops = 2 * B_pad * (D_in * H1 + H1 * H2 + H2 * H3 + H3 * D_out)
    bytes_accessed = 4 * (B_pad * D_in + B_pad * D_out
                          + sum(p.size for p in params))

    yT = pl.pallas_call(
        mlp_kernel,
        out_shape=jax.ShapeDtypeStruct((1, B_pad), jnp.float32),
        grid=(nb,),
        in_specs=[pl.BlockSpec((tb, D_in), lambda i: (i, 0)),
                  const_spec(w1p), const_spec(b1p),
                  const_spec(w2p), const_spec(w3p), const_spec(w4p)],
        out_specs=pl.BlockSpec((1, tb), lambda i: (0, i)),
        compiler_params=pltpu.CompilerParams(
            dimension_semantics=("parallel",)),
        cost_estimate=pl.CostEstimate(flops=flops, transcendentals=0,
                                      bytes_accessed=bytes_accessed),
    )(x_pad, w1p, b1p, w2p, w3p, w4p)

    # (1, B) -> (B, 1): layout-identical reshape, free.
    return yT[:, :B].T


def init_params(key):
    # PyTorch nn.Linear-style init: W is (out, in), U(-1/sqrt(fan_in), 1/sqrt(fan_in)).
    def linear(k, fan_in, fan_out):
        kw, kb = jax.random.split(k)
        bound = 1.0 / jnp.sqrt(fan_in)
        w = jax.random.uniform(kw, (fan_out, fan_in), jnp.float32, -bound, bound)
        b = jax.random.uniform(kb, (fan_out,), jnp.float32, -bound, bound)
        return w, b

    k1, k2, k3, k4 = jax.random.split(key, 4)
    return (linear(k1, D_in, H1), linear(k2, H1, H2),
            linear(k3, H2, H3), linear(k4, D_out and H3, D_out))


def prepare_params(raw):
    # Zero-pad to sublane-aligned tiles once, outside the kernel, and fold biases
    # b2/b3/b4 into weight column ONE_ROW using an activation row pinned at 1.0.
    # Invariant: padded hidden rows 9..14 stay exactly 0 through every layer; row 15
    # stays exactly 1.0 (relu(1)=1), so the fold is exact.
    (w1, b1), (w2, b2), (w3, b3), (w4, b4) = raw
    w1p = jnp.zeros((H_PAD, D_in), jnp.float32).at[:H1, :].set(w1)
    b1p = (jnp.zeros((H_PAD, 1), jnp.float32)
           .at[:H1, 0].set(b1)
           .at[ONE_ROW, 0].set(1.0))                       # creates the ones row
    w2p = (jnp.zeros((H_PAD, H_PAD), jnp.float32)
           .at[:H2, :H1].set(w2)
           .at[:H2, ONE_ROW].set(b2)                       # folded b2
           .at[ONE_ROW, ONE_ROW].set(1.0))                 # pass ones row through
    w3p = (jnp.zeros((H_PAD, H_PAD), jnp.float32)
           .at[:H3, :H2].set(w3)
           .at[:H3, ONE_ROW].set(b3)
           .at[ONE_ROW, ONE_ROW].set(1.0))
    w4p = (jnp.zeros((D_out, H_PAD), jnp.float32)
           .at[:D_out, :H3].set(w4)
           .at[:D_out, ONE_ROW].set(b4))                   # folded b4
    return w1p, b1p, w2p, w3p, w4p


def reference_forward(x, raw):
    (w1, b1), (w2, b2), (w3, b3), (w4, b4) = raw
    h = jnp.maximum(x @ w1.T + b1, 0.0)
    h = jnp.maximum(h @ w2.T + b2, 0.0)
    h = jnp.maximum(h @ w3.T + b3, 0.0)
    return h @ w4.T + b4


if __name__ == "__main__":
    key = jax.random.PRNGKey(0)
    kx, kp = jax.random.split(key)

    B = 2048                      # tb caps to 1024 -> 2 grid steps (exercises pipeline
                                  # + v7x megacore split) with zero batch padding
    x = jax.random.normal(kx, (B, D_in), jnp.float32)
    raw = init_params(kp)
    params = prepare_params(raw)

    fwd = jax.jit(lambda xx: mymodel_forward(xx, params))
    y = jax.block_until_ready(fwd(x))

    y_ref = reference_forward(x, raw)
    assert y.shape == (B, D_out)
    assert jnp.allclose(y, y_ref, atol=1e-4, rtol=1e-4), "mismatch vs reference"
    print("KERNEL_OK")
</pallas_src>

<mosaic_0001>
module attributes {stable_mosaic.version = 11 : i64} {
  func.func @mlp_kernel(%arg0: i32, %arg1: memref<1024x10xf32, #tpu.memory_space<vmem>>, %arg2: memref<16x10xf32, #tpu.memory_space<vmem>>, %arg3: memref<16x1xf32, #tpu.memory_space<vmem>>, %arg4: memref<16x16xf32, #tpu.memory_space<vmem>>, %arg5: memref<16x16xf32, #tpu.memory_space<vmem>>, %arg6: memref<1x16xf32, #tpu.memory_space<vmem>>, %arg7: memref<1x1024xf32, #tpu.memory_space<vmem>>) attributes {dimension_semantics = [#tpu.dimension_semantics<parallel>], iteration_bounds = array<i64: 2>, scalar_prefetch = 0 : i64, scratch_operands = 0 : i64, tpu.core_type = #tpu.core_type<tc>, window_params = [{transform_indices = @transform_0, window_bounds = array<i64: 1024, 10>}, {pipeline_mode = #tpu.pipeline_mode<synchronous>, transform_indices = @transform_1, window_bounds = array<i64: 16, 10>}, {pipeline_mode = #tpu.pipeline_mode<synchronous>, transform_indices = @transform_2, window_bounds = array<i64: 16, 1>}, {pipeline_mode = #tpu.pipeline_mode<synchronous>, transform_indices = @transform_3, window_bounds = array<i64: 16, 16>}, {pipeline_mode = #tpu.pipeline_mode<synchronous>, transform_indices = @transform_4, window_bounds = array<i64: 16, 16>}, {pipeline_mode = #tpu.pipeline_mode<synchronous>, transform_indices = @transform_5, window_bounds = array<i64: 1, 16>}, {transform_indices = @transform_6, window_bounds = array<i64: 1, 1024>}]} {
    %c0 = arith.constant 0 : index
    %c0_0 = arith.constant 0 : index
    %0 = vector.load %arg1[%c0, %c0_0] : memref<1024x10xf32, #tpu.memory_space<vmem>>, vector<1024x10xf32>
    %c0_1 = arith.constant 0 : index
    %c0_2 = arith.constant 0 : index
    %1 = vector.load %arg2[%c0_1, %c0_2] : memref<16x10xf32, #tpu.memory_space<vmem>>, vector<16x10xf32>
    %cst = arith.constant dense<0.000000e+00> : vector<16x1024xf32>
    %2 = tpu.matmul %1, %0, %cst {dimension_numbers = #tpu.dot_dimension_numbers<[1], [1], [0], [0], [0, 0, 1, 0], [], []>} : vector<16x10xf32>, vector<1024x10xf32>, vector<16x1024xf32> -> vector<16x1024xf32>
    %c0_3 = arith.constant 0 : index
    %c0_4 = arith.constant 0 : index
    %3 = vector.load %arg3[%c0_3, %c0_4] : memref<16x1xf32, #tpu.memory_space<vmem>>, vector<16x1xf32>
    %4 = vector.broadcast %3 : vector<16x1xf32> to vector<16x1024xf32>
    %5 = arith.addf %2, %4 : vector<16x1024xf32>
    %cst_5 = arith.constant 0.000000e+00 : f32
    %6 = vector.broadcast %cst_5 : f32 to vector<16x1024xf32>
    %7 = arith.maximumf %5, %6 : vector<16x1024xf32>
    %c0_6 = arith.constant 0 : index
    %c0_7 = arith.constant 0 : index
    %8 = vector.load %arg4[%c0_6, %c0_7] : memref<16x16xf32, #tpu.memory_space<vmem>>, vector<16x16xf32>
    %cst_8 = arith.constant dense<0.000000e+00> : vector<16x1024xf32>
    %9 = tpu.matmul %8, %7, %cst_8 {dimension_numbers = #tpu.dot_dimension_numbers<[1], [0], [0], [1], [0, 0, 1, 1], [], []>} : vector<16x16xf32>, vector<16x1024xf32>, vector<16x1024xf32> -> vector<16x1024xf32>
    %cst_9 = arith.constant 0.000000e+00 : f32
    %10 = vector.broadcast %cst_9 : f32 to vector<16x1024xf32>
    %11 = arith.maximumf %9, %10 : vector<16x1024xf32>
    %c0_10 = arith.constant 0 : index
    %c0_11 = arith.constant 0 : index
    %12 = vector.load %arg5[%c0_10, %c0_11] : memref<16x16xf32, #tpu.memory_space<vmem>>, vector<16x16xf32>
    %cst_12 = arith.constant dense<0.000000e+00> : vector<16x1024xf32>
    %13 = tpu.matmul %12, %11, %cst_12 {dimension_numbers = #tpu.dot_dimension_numbers<[1], [0], [0], [1], [0, 0, 1, 1], [], []>} : vector<16x16xf32>, vector<16x1024xf32>, vector<16x1024xf32> -> vector<16x1024xf32>
    %cst_13 = arith.constant 0.000000e+00 : f32
    %14 = vector.broadcast %cst_13 : f32 to vector<16x1024xf32>
    %15 = arith.maximumf %13, %14 : vector<16x1024xf32>
    %c0_14 = arith.constant 0 : index
    %c0_15 = arith.constant 0 : index
    %16 = vector.load %arg6[%c0_14, %c0_15] : memref<1x16xf32, #tpu.memory_space<vmem>>, vector<1x16xf32>
    %cst_16 = arith.constant dense<0.000000e+00> : vector<1x1024xf32>
    %17 = tpu.matmul %16, %15, %cst_16 {dimension_numbers = #tpu.dot_dimension_numbers<[1], [0], [0], [1], [0, 0, 1, 1], [], []>} : vector<1x16xf32>, vector<16x1024xf32>, vector<1x1024xf32> -> vector<1x1024xf32>
    %c0_17 = arith.constant 0 : index
    %c0_18 = arith.constant 0 : index
    %18 = vector.load %arg7[%c0_17, %c0_18] : memref<1x1024xf32, #tpu.memory_space<vmem>>, vector<1x1024xf32>
    tpu.vector_store %arg7[%c0_17, %c0_18], %17 {strides = array<i32>} : memref<1x1024xf32, #tpu.memory_space<vmem>>, vector<1x1024xf32>,
    return
  }
  func.func @transform_0(%arg0: i32) -> (i32, i32) {
    %c0_i32 = arith.constant 0 : i32
    %c0_i32_0 = arith.constant 0 : i32
    return %arg0, %c0_i32 : i32, i32
  }
  func.func @transform_1(%arg0: i32) -> (i32, i32) {
    %c0_i32 = arith.constant 0 : i32
    %c0_i32_0 = arith.constant 0 : i32
    %c0_i32_1 = arith.constant 0 : i32
    return %c0_i32, %c0_i32_0 : i32, i32
  }
  func.func @transform_2(%arg0: i32) -> (i32, i32) {
    %c0_i32 = arith.constant 0 : i32
    %c0_i32_0 = arith.constant 0 : i32
    %c0_i32_1 = arith.constant 0 : i32
    return %c0_i32, %c0_i32_0 : i32, i32
  }
  func.func @transform_3(%arg0: i32) -> (i32, i32) {
    %c0_i32 = arith.constant 0 : i32
    %c0_i32_0 = arith.constant 0 : i32
    %c0_i32_1 = arith.constant 0 : i32
    return %c0_i32, %c0_i32_0 : i32, i32
  }
  func.func @transform_4(%arg0: i32) -> (i32, i32) {
    %c0_i32 = arith.constant 0 : i32
    %c0_i32_0 = arith.constant 0 : i32
    %c0_i32_1 = arith.constant 0 : i32
    return %c0_i32, %c0_i32_0 : i32, i32
  }
  func.func @transform_5(%arg0: i32) -> (i32, i32) {
    %c0_i32 = arith.constant 0 : i32
    %c0_i32_0 = arith.constant 0 : i32
    %c0_i32_1 = arith.constant 0 : i32
    return %c0_i32, %c0_i32_0 : i32, i32
  }
  func.func @transform_6(%arg0: i32) -> (i32, i32) {
    %c0_i32 = arith.constant 0 : i32
    %c0_i32_0 = arith.constant 0 : i32
    return %c0_i32, %arg0 : i32, i32
  }
}

</mosaic_0001>

<llo_original>
// kernel: _lambda_.1
$region0: #{_lambda_.1}
  #allocation0 [shape = 'u32[]', space=smem, size = 0x4, offset = 0x4, fixed_abs, tag = 'smem constant byte address 0x4 - core index']
  #allocation1 [shape = 'u32[72,128]{1,0:T(1,128)}', space=vmem, size = 0x9000, scoped, tag = 'internal scratch']
  %s0 = inlined_call_operand.vmem [shape: f32[2048,10], index: 0, kind: input, shape index: {}]
  %s1 = inlined_call_operand.vmem [shape: f32[16,10], index: 1, kind: input, shape index: {}]
  %s2 = inlined_call_operand.vmem [shape: f32[16,1], index: 2, kind: input, shape index: {}]
  %s3 = inlined_call_operand.vmem [shape: f32[16,16], index: 3, kind: input, shape index: {}]
  %s4 = inlined_call_operand.vmem [shape: f32[16,16], index: 4, kind: input, shape index: {}]
  %s5 = inlined_call_operand.vmem [shape: f32[1,16], index: 5, kind: input, shape index: {}]
  %s6 = inlined_call_operand.hbm [shape: f32[1,2048], index: 6, kind: output, shape index: {}]
  %s7 = sld [smem:[#allocation0]]
  $region57: #{_lambda_.1} parent=0
    _
  %s9 = ssub.s32 1, %s7
  %s10 = scalar_select 0, %s9, %s7
  $region1: #{_lambda_.1} parent=0
    #allocation2 [shape = 'u8[8192]{0}', space=vmem, size = 0x2000, scoped, tag = 'output window, operand 0']
    #allocation3 [shape = 's32[2]{0}', space=sflag, size = 0x8, scoped, tag = 'scoped memory for _lambda_.1']
    %11 = vsyncpa [#allocation3], 0
    %s12 = scalar_lea.sflag [#allocation3], 1
    %13 = vsyncpa %s12, 0
    loop: start=0, step=1, limit=4
    $region2: #{_lambda_.1} parent=1 // loop_pre_header
      _
    $region3: #{_lambda_.1} parent=1 // loop_header
      %s15 = sphi 0, %s19
      %p16 = scmp.ge.s32.totalorder %s15, 4
      %s25 = sphi 0, %s27
      %s28 = sphi 0, %s25
      %s29 = sphi 0, %s28
      %s45 = sphi 0, %s29
      %s49 = sphi 0, %s49
      %s51 = sphi 0, %s49
      %s52 = sphi 0, %s51
      %s66 = sphi 0, %s52
      %s70 = sphi 0, %s70
      %s72 = sphi 0, %s70
      %s73 = sphi 0, %s72
      %s87 = sphi 0, %s73
      %s91 = sphi 0, %s91
      %s93 = sphi 0, %s91
      %s94 = sphi 0, %s93
      %s108 = sphi 0, %s94
      %s112 = sphi 0, %s112
      %s114 = sphi 0, %s112
      %s115 = sphi 0, %s114
      %s129 = sphi 0, %s115
      %s133 = sphi 0, %s133
      %s135 = sphi 0, %s133
      %s136 = sphi 0, %s135
      %s150 = sphi 0, %s136
      %s156 = sphi 0, %s158
      %s159 = sphi 0, %s156
      %s160 = sphi 0, %s159
      %s176 = sphi 0, %s160
    $region4: #{_lambda_.1} parent=1 // loop_header_branch
      %18 = sbr.rel (%p16) target = $region8
    $region5: #{_lambda_.1} parent=1 // loop_body
      %s20 = ssub.s32 %s15, 1
      %s21 = ssub.s32 %s15, 2
      %s22 = sadd.s32 %s15, 1
      %s23 = ssub.s32 %s15, %s22
      %p24 = scmp.eq.s32.totalorder %s23, 0
      %s26 = sadd.s32 %s25, 1
      %s27 = scalar_select %p24, %s25, %s26
      %p30 = pneg %p24
      %p31 = scmp.eq.s32.totalorder %s15, 1
      %p32 = por %p30, %p31
      %p33 = scmp.ne.s32.totalorder %s25, %s28
      %p34 = scmp.eq.s32.totalorder %s15, 0
      %p35 = por %p33, %p34
      %p36 = scmp.ne.s32.totalorder %s25, %s28
      %p37 = scmp.eq.s32.totalorder %s20, 1
      %p38 = por %p36, %p37
      %p39 = scmp.ne.s32.totalorder %s28, %s29
      %p40 = scmp.eq.s32.totalorder %s20, 0
      %p41 = por %p39, %p40
      %p42 = scmp.ne.s32.totalorder %s28, %s29
      %p43 = scmp.eq.s32.totalorder %s21, 1
      %p44 = por %p42, %p43
      %p46 = scmp.ne.s32.totalorder %s29, %s45
      %p47 = scmp.eq.s32.totalorder %s21, 0
      %p48 = por %p46, %p47
      %s50 = sadd.s32 %s49, 1
      %p53 = scmp.eq.s32.totalorder %s15, 1
      %p54 = scmp.ne.s32.totalorder %s49, %s51
      %p55 = scmp.eq.s32.totalorder %s15, 0
      %p56 = por %p54, %p55
      %p57 = scmp.ne.s32.totalorder %s49, %s51
      %p58 = scmp.eq.s32.totalorder %s20, 1
      %p59 = por %p57, %p58
      %p60 = scmp.ne.s32.totalorder %s51, %s52
      %p61 = scmp.eq.s32.totalorder %s20, 0
      %p62 = por %p60, %p61
      %p63 = scmp.ne.s32.totalorder %s51, %s52
      %p64 = scmp.eq.s32.totalorder %s21, 1
      %p65 = por %p63, %p64
      %p67 = scmp.ne.s32.totalorder %s52, %s66
      %p68 = scmp.eq.s32.totalorder %s21, 0
      %p69 = por %p67, %p68
      %s71 = sadd.s32 %s70, 1
      %p74 = scmp.eq.s32.totalorder %s15, 1
      %p75 = scmp.ne.s32.totalorder %s70, %s72
      %p76 = scmp.eq.s32.totalorder %s15, 0
      %p77 = por %p75, %p76
      %p78 = scmp.ne.s32.totalorder %s70, %s72
      %p79 = scmp.eq.s32.totalorder %s20, 1
      %p80 = por %p78, %p79
      %p81 = scmp.ne.s32.totalorder %s72, %s73
      %p82 = scmp.eq.s32.totalorder %s20, 0
      %p83 = por %p81, %p82
      %p84 = scmp.ne.s32.totalorder %s72, %s73
      %p85 = scmp.eq.s32.totalorder %s21, 1
      %p86 = por %p84, %p85
      %p88 = scmp.ne.s32.totalorder %s73, %s87
      %p89 = scmp.eq.s32.totalorder %s21, 0
      %p90 = por %p88, %p89
      %s92 = sadd.s32 %s91, 1
      %p95 = scmp.eq.s32.totalorder %s15, 1
      %p96 = scmp.ne.s32.totalorder %s91, %s93
      %p97 = scmp.eq.s32.totalorder %s15, 0
      %p98 = por %p96, %p97
      %p99 = scmp.ne.s32.totalorder %s91, %s93
      %p100 = scmp.eq.s32.totalorder %s20, 1
      %p101 = por %p99, %p100
      %p102 = scmp.ne.s32.totalorder %s93, %s94
      %p103 = scmp.eq.s32.totalorder %s20, 0
      %p104 = por %p102, %p103
      %p105 = scmp.ne.s32.totalorder %s93, %s94
      %p106 = scmp.eq.s32.totalorder %s21, 1
      %p107 = por %p105, %p106
      %p109 = scmp.ne.s32.totalorder %s94, %s108
      %p110 = scmp.eq.s32.totalorder %s21, 0
      %p111 = por %p109, %p110
      %s113 = sadd.s32 %s112, 1
      %p116 = scmp.eq.s32.totalorder %s15, 1
      %p117 = scmp.ne.s32.totalorder %s112, %s114
      %p118 = scmp.eq.s32.totalorder %s15, 0
      %p119 = por %p117, %p118
      %p120 = scmp.ne.s32.totalorder %s112, %s114
      %p121 = scmp.eq.s32.totalorder %s20, 1
      %p122 = por %p120, %p121
      %p123 = scmp.ne.s32.totalorder %s114, %s115
      %p124 = scmp.eq.s32.totalorder %s20, 0
      %p125 = por %p123, %p124
      %p126 = scmp.ne.s32.totalorder %s114, %s115
      %p127 = scmp.eq.s32.totalorder %s21, 1
      %p128 = por %p126, %p127
      %p130 = scmp.ne.s32.totalorder %s115, %s129
      %p131 = scmp.eq.s32.totalorder %s21, 0
      %p132 = por %p130, %p131
      %s134 = sadd.s32 %s133, 1
      %p137 = scmp.eq.s32.totalorder %s15, 1
      %p138 = scmp.ne.s32.totalorder %s133, %s135
      %p139 = scmp.eq.s32.totalorder %s15, 0
      %p140 = por %p138, %p139
      %p141 = scmp.ne.s32.totalorder %s133, %s135
      %p142 = scmp.eq.s32.totalorder %s20, 1
      %p143 = por %p141, %p142
      %p144 = scmp.ne.s32.totalorder %s135, %s136
      %p145 = scmp.eq.s32.totalorder %s20, 0
      %p146 = por %p144, %p145
      %p147 = scmp.ne.s32.totalorder %s135, %s136
      %p148 = scmp.eq.s32.totalorder %s21, 1
      %p149 = por %p147, %p148
      %p151 = scmp.ne.s32.totalorder %s136, %s150
      %p152 = scmp.eq.s32.totalorder %s21, 0
      %p153 = por %p151, %p152
      %s154 = ssub.s32 %s15, %s22
      %p155 = scmp.eq.s32.totalorder %s154, 0
      %s157 = sadd.s32 %s156, 1
      %s158 = scalar_select %p155, %s156, %s157
      %p161 = pneg %p155
      %p162 = scmp.eq.s32.totalorder %s15, 1
      %p163 = por %p161, %p162
      %p164 = scmp.ne.s32.totalorder %s156, %s159
      %p165 = scmp.eq.s32.totalorder %s15, 0
      %p166 = por %p164, %p165
      %p167 = scmp.ne.s32.totalorder %s156, %s159
      %p168 = scmp.eq.s32.totalorder %s20, 1
      %p169 = por %p167, %p168
      %p170 = scmp.ne.s32.totalorder %s159, %s160
      %p171 = scmp.eq.s32.totalorder %s20, 0
      %p172 = por %p170, %p171
      %p173 = scmp.ne.s32.totalorder %s159, %s160
      %p174 = scmp.eq.s32.totalorder %s21, 1
      %p175 = por %p173, %p174
      %p177 = scmp.ne.s32.totalorder %s160, %s176
      %p178 = scmp.eq.s32.totalorder %s21, 0
      %p179 = por %p177, %p178
      %p180 = scmp.le.s32.totalorder 1, %s15
      %p181 = scmp.lt.s32.totalorder %s15, 3
      %p182 = pnand %p180, %p181
      %p183 = pneg %p182
      // Predicated region
      $region9: #{_lambda_.1} parent=5 // pred_check
        _
      $region10: #{_lambda_.1} parent=5 // pred_check_branch
        %185 = sbr.rel (%p182) target = $region12
      $region11: #{_lambda_.1} parent=5 // pred_region
        %s186 = ssub.s32 %s15, 1
        // Predicated region
        $region13: #{_lambda_.1} parent=11 // pred_check
          %p187 = pneg %p62
        $region14: #{_lambda_.1} parent=11 // pred_check_branch
          %189 = sbr.rel (%p187) target = $region16
        $region15: #{_lambda_.1} parent=11 // pred_region
          _
        $region16: #{_lambda_.1} parent=11 // pred_fallthru
          _
        // Predicated region
        $region17: #{_lambda_.1} parent=11 // pred_check
          %p190 = pneg %p83
        $region18: #{_lambda_.1} parent=11 // pred_check_branch
          %192 = sbr.rel (%p190) target = $region20
        $region19: #{_lambda_.1} parent=11 // pred_region
          _
        $region20: #{_lambda_.1} parent=11 // pred_fallthru
          _
        // Predicated region
        $region21: #{_lambda_.1} parent=11 // pred_check
          %p193 = pneg %p104
        $region22: #{_lambda_.1} parent=11 // pred_check_branch
          %195 = sbr.rel (%p193) target = $region24
        $region23: #{_lambda_.1} parent=11 // pred_region
          _
        $region24: #{_lambda_.1} parent=11 // pred_fallthru
          _
        // Predicated region
        $region25: #{_lambda_.1} parent=11 // pred_check
          %p196 = pneg %p125
        $region26: #{_lambda_.1} parent=11 // pred_check_branch
          %198 = sbr.rel (%p196) target = $region28
        $region27: #{_lambda_.1} parent=11 // pred_region
          _
        $region28: #{_lambda_.1} parent=11 // pred_fallthru
          _
        // Predicated region
        $region29: #{_lambda_.1} parent=11 // pred_check
          %p199 = pneg %p146
        $region30: #{_lambda_.1} parent=11 // pred_check_branch
          %201 = sbr.rel (%p199) target = $region32
        $region31: #{_lambda_.1} parent=11 // pred_region
          _
        $region32: #{_lambda_.1} parent=11 // pred_fallthru
          _
      $region12: #{_lambda_.1} parent=5 // pred_fallthru
        _
      %p202 = scmp.lt.s32.totalorder %s15, 2
      // Predicated region
      $region33: #{_lambda_.1} parent=5 // pred_check
        %p203 = pneg %p202
      $region34: #{_lambda_.1} parent=5 // pred_check_branch
        %205 = sbr.rel (%p203) target = $region36
      $region35: #{_lambda_.1} parent=5 // pred_region
        // Predicated region
        $region37: #{_lambda_.1} parent=35 // pred_check
          %p206 = pneg %p35
        $region38: #{_lambda_.1} parent=35 // pred_check_branch
          %208 = sbr.rel (%p206) target = $region40
        $region39: #{_lambda_.1} parent=35 // pred_region
          %s209 = smul.u32 128, %s15
          %p210 = scmp.lt.s32.totalorder %s209, 255
          %s211 = scalar_select %p210, %s209, 255
          %s212 = smul.addr %s211, 8
          %s213 = scalar_lea.vmem %s0, %s212
          %s214 = smul.u32 128, %s15
        $region40: #{_lambda_.1} parent=35 // pred_fallthru
          _
      $region36: #{_lambda_.1} parent=5 // pred_fallthru
        _
      %p215 = scmp.le.s32.totalorder 1, %s15
      %p216 = scmp.lt.s32.totalorder %s15, 3
      %p217 = pnand %p215, %p216
      %p218 = pneg %p217
      // Predicated region
      $region41: #{_lambda_.1} parent=5 // pred_check
        _
      $region42: #{_lambda_.1} parent=5 // pred_check_branch
        %220 = sbr.rel (%p217) target = $region44
      $region43: #{_lambda_.1} parent=5 // pred_region
        %s221 = ssub.s32 %s15, 1
        %s222 = smul.u32 128, %s20
        %p223 = scmp.lt.s32.totalorder %s222, 255
        %s224 = scalar_select %p223, %s222, 255
        %s225 = smul.addr %s224, 8
        %s226 = scalar_lea.vmem %s0, %s225
        %p227 = pneg %p41
        %p228 = pneg %p38
        %p229 = pneg %p62
        %p230 = pneg %p59
        %p231 = pneg %p83
        %p232 = pneg %p80
        %p233 = pneg %p104
        %p234 = pneg %p101
        %p235 = pneg %p125
        %p236 = pneg %p122
        %p237 = pneg %p146
        %p238 = pneg %p143
        %p239 = pneg %p172
        %p240 = pneg %p169
        %s241 = sand.u32 %s159, 1
        %s242 = scalar_lea.sflag [#allocation3], %s241
        %s243 = sand.u32 %s159, 1
        %s244 = smul.addr %s243, 8
        %s245 = scalar_lea.vmem [#allocation2], %s244
        %s246 = smul.u32 128, %s20
        %p247 = scmp.lt.s32.totalorder %s246, 255
        %s248 = scalar_select %p247, %s246, 255
        %s249 = smul.addr %s248, 8
        %s250 = scalar_lea.vmem %s0, %s249
        %s251 = smul.u32 128, %s20
        %s252 = smul.u32 8, %s20
        %v253 = vld [vmem:[%s250] sm:$0xff]
        %v254 = vld [vmem:[%s250 + $0x8] sm:$0xff]
        %v255 = vld [vmem:[%s250 + $0x10] sm:$0xff]
        %v256 = vld [vmem:[%s250 + $0x18] sm:$0xff]
        %v257 = vld [vmem:[%s250 + $0x20] sm:$0xff]
        %v258 = vld [vmem:[%s250 + $0x28] sm:$0xff]
        %v259 = vld [vmem:[%s250 + $0x30] sm:$0xff]
        %v260 = vld [vmem:[%s250 + $0x38] sm:$0xff]
        %v261 = vld [vmem:[%s250 + $0x40] sm:$0xff]
        %v262 = vld [vmem:[%s250 + $0x48] sm:$0xff]
        %v263 = vld [vmem:[%s250 + $0x50] sm:$0xff]
        %v264 = vld [vmem:[%s250 + $0x58] sm:$0xff]
        %v265 = vld [vmem:[%s250 + $0x60] sm:$0xff]
        %v266 = vld [vmem:[%s250 + $0x68] sm:$0xff]
        %v267 = vld [vmem:[%s250 + $0x70] sm:$0xff]
        %v268 = vld [vmem:[%s250 + $0x78] sm:$0xff]
        %v269 = vld [vmem:[%s250 + $0x80] sm:$0xff]
        %v270 = vld [vmem:[%s250 + $0x88] sm:$0xff]
        %v271 = vld [vmem:[%s250 + $0x90] sm:$0xff]
        %v272 = vld [vmem:[%s250 + $0x98] sm:$0xff]
        %v273 = vld [vmem:[%s250 + $0xa0] sm:$0xff]
        %v274 = vld [vmem:[%s250 + $0xa8] sm:$0xff]
        %v275 = vld [vmem:[%s250 + $0xb0] sm:$0xff]
        %v276 = vld [vmem:[%s250 + $0xb8] sm:$0xff]
        %v277 = vld [vmem:[%s250 + $0xc0] sm:$0xff]
        %v278 = vld [vmem:[%s250 + $0xc8] sm:$0xff]
        %v279 = vld [vmem:[%s250 + $0xd0] sm:$0xff]
        %v280 = vld [vmem:[%s250 + $0xd8] sm:$0xff]
        %v281 = vld [vmem:[%s250 + $0xe0] sm:$0xff]
        %v282 = vld [vmem:[%s250 + $0xe8] sm:$0xff]
        %v283 = vld [vmem:[%s250 + $0xf0] sm:$0xff]
        %v284 = vld [vmem:[%s250 + $0xf8] sm:$0xff]
        %v285 = vld [vmem:[%s250 + $0x100] sm:$0xff]
        %v286 = vld [vmem:[%s250 + $0x108] sm:$0xff]
        %v287 = vld [vmem:[%s250 + $0x110] sm:$0xff]
        %v288 = vld [vmem:[%s250 + $0x118] sm:$0xff]
        %v289 = vld [vmem:[%s250 + $0x120] sm:$0xff]
        %v290 = vld [vmem:[%s250 + $0x128] sm:$0xff]
        %v291 = vld [vmem:[%s250 + $0x130] sm:$0xff]
        %v292 = vld [vmem:[%s250 + $0x138] sm:$0xff]
        %v293 = vld [vmem:[%s250 + $0x140] sm:$0xff]
        %v294 = vld [vmem:[%s250 + $0x148] sm:$0xff]
        %v295 = vld [vmem:[%s250 + $0x150] sm:$0xff]
        %v296 = vld [vmem:[%s250 + $0x158] sm:$0xff]
        %v297 = vld [vmem:[%s250 + $0x160] sm:$0xff]
        %v298 = vld [vmem:[%s250 + $0x168] sm:$0xff]
        %v299 = vld [vmem:[%s250 + $0x170] sm:$0xff]
        %v300 = vld [vmem:[%s250 + $0x178] sm:$0xff]
        %v301 = vld [vmem:[%s250 + $0x180] sm:$0xff]
        %v302 = vld [vmem:[%s250 + $0x188] sm:$0xff]
        %v303 = vld [vmem:[%s250 + $0x190] sm:$0xff]
        %v304 = vld [vmem:[%s250 + $0x198] sm:$0xff]
        %v305 = vld [vmem:[%s250 + $0x1a0] sm:$0xff]
        %v306 = vld [vmem:[%s250 + $0x1a8] sm:$0xff]
        %v307 = vld [vmem:[%s250 + $0x1b0] sm:$0xff]
        %v308 = vld [vmem:[%s250 + $0x1b8] sm:$0xff]
        %v309 = vld [vmem:[%s250 + $0x1c0] sm:$0xff]
        %v310 = vld [vmem:[%s250 + $0x1c8] sm:$0xff]
        %v311 = vld [vmem:[%s250 + $0x1d0] sm:$0xff]
        %v312 = vld [vmem:[%s250 + $0x1d8] sm:$0xff]
        %v313 = vld [vmem:[%s250 + $0x1e0] sm:$0xff]
        %v314 = vld [vmem:[%s250 + $0x1e8] sm:$0xff]
        %v315 = vld [vmem:[%s250 + $0x1f0] sm:$0xff]
        %v316 = vld [vmem:[%s250 + $0x1f8] sm:$0xff]
        %v317 = vld [vmem:[%s250 + $0x200] sm:$0xff]
        %v318 = vld [vmem:[%s250 + $0x208] sm:$0xff]
        %v319 = vld [vmem:[%s250 + $0x210] sm:$0xff]
        %v320 = vld [vmem:[%s250 + $0x218] sm:$0xff]
        %v321 = vld [vmem:[%s250 + $0x220] sm:$0xff]
        %v322 = vld [vmem:[%s250 + $0x228] sm:$0xff]
        %v323 = vld [vmem:[%s250 + $0x230] sm:$0xff]
        %v324 = vld [vmem:[%s250 + $0x238] sm:$0xff]
        %v325 = vld [vmem:[%s250 + $0x240] sm:$0xff]
        %v326 = vld [vmem:[%s250 + $0x248] sm:$0xff]
        %v327 = vld [vmem:[%s250 + $0x250] sm:$0xff]
        %v328 = vld [vmem:[%s250 + $0x258] sm:$0xff]
        %v329 = vld [vmem:[%s250 + $0x260] sm:$0xff]
        %v330 = vld [vmem:[%s250 + $0x268] sm:$0xff]
        %v331 = vld [vmem:[%s250 + $0x270] sm:$0xff]
        %v332 = vld [vmem:[%s250 + $0x278] sm:$0xff]
        %v333 = vld [vmem:[%s250 + $0x280] sm:$0xff]
        %v334 = vld [vmem:[%s250 + $0x288] sm:$0xff]
        %v335 = vld [vmem:[%s250 + $0x290] sm:$0xff]
        %v336 = vld [vmem:[%s250 + $0x298] sm:$0xff]
        %v337 = vld [vmem:[%s250 + $0x2a0] sm:$0xff]
        %v338 = vld [vmem:[%s250 + $0x2a8] sm:$0xff]
        %v339 = vld [vmem:[%s250 + $0x2b0] sm:$0xff]
        %v340 = vld [vmem:[%s250 + $0x2b8] sm:$0xff]
        %v341 = vld [vmem:[%s250 + $0x2c0] sm:$0xff]
        %v342 = vld [vmem:[%s250 + $0x2c8] sm:$0xff]
        %v343 = vld [vmem:[%s250 + $0x2d0] sm:$0xff]
        %v344 = vld [vmem:[%s250 + $0x2d8] sm:$0xff]
        %v345 = vld [vmem:[%s250 + $0x2e0] sm:$0xff]
        %v346 = vld [vmem:[%s250 + $0x2e8] sm:$0xff]
        %v347 = vld [vmem:[%s250 + $0x2f0] sm:$0xff]
        %v348 = vld [vmem:[%s250 + $0x2f8] sm:$0xff]
        %v349 = vld [vmem:[%s250 + $0x300] sm:$0xff]
        %v350 = vld [vmem:[%s250 + $0x308] sm:$0xff]
        %v351 = vld [vmem:[%s250 + $0x310] sm:$0xff]
        %v352 = vld [vmem:[%s250 + $0x318] sm:$0xff]
        %v353 = vld [vmem:[%s250 + $0x320] sm:$0xff]
        %v354 = vld [vmem:[%s250 + $0x328] sm:$0xff]
        %v355 = vld [vmem:[%s250 + $0x330] sm:$0xff]
        %v356 = vld [vmem:[%s250 + $0x338] sm:$0xff]
        %v357 = vld [vmem:[%s250 + $0x340] sm:$0xff]
        %v358 = vld [vmem:[%s250 + $0x348] sm:$0xff]
        %v359 = vld [vmem:[%s250 + $0x350] sm:$0xff]
        %v360 = vld [vmem:[%s250 + $0x358] sm:$0xff]
        %v361 = vld [vmem:[%s250 + $0x360] sm:$0xff]
        %v362 = vld [vmem:[%s250 + $0x368] sm:$0xff]
        %v363 = vld [vmem:[%s250 + $0x370] sm:$0xff]
        %v364 = vld [vmem:[%s250 + $0x378] sm:$0xff]
        %v365 = vld [vmem:[%s250 + $0x380] sm:$0xff]
        %v366 = vld [vmem:[%s250 + $0x388] sm:$0xff]
        %v367 = vld [vmem:[%s250 + $0x390] sm:$0xff]
        %v368 = vld [vmem:[%s250 + $0x398] sm:$0xff]
        %v369 = vld [vmem:[%s250 + $0x3a0] sm:$0xff]
        %v370 = vld [vmem:[%s250 + $0x3a8] sm:$0xff]
        %v371 = vld [vmem:[%s250 + $0x3b0] sm:$0xff]
        %v372 = vld [vmem:[%s250 + $0x3b8] sm:$0xff]
        %v373 = vld [vmem:[%s250 + $0x3c0] sm:$0xff]
        %v374 = vld [vmem:[%s250 + $0x3c8] sm:$0xff]
        %v375 = vld [vmem:[%s250 + $0x3d0] sm:$0xff]
        %v376 = vld [vmem:[%s250 + $0x3d8] sm:$0xff]
        %v377 = vld [vmem:[%s250 + $0x3e0] sm:$0xff]
        %v378 = vld [vmem:[%s250 + $0x3e8] sm:$0xff]
        %v379 = vld [vmem:[%s250 + $0x3f0] sm:$0xff]
        %v380 = vld [vmem:[%s250 + $0x3f8] sm:$0xff]
        %v381 = vld [vmem:[%s1] sm:$0xff]
        %v382 = vld [vmem:[%s1 + $0x8] sm:$0xff]
        %v383 = vld [vmem:[%s2] sm:$0xff]
        %v384 = vld [vmem:[%s2 + $0x8] sm:$0xff]
        %386 = vset.pattern.permute.xlu0 0
        %387 = vperm.xlu0 %386, %v383
        %v388 = vpop.permute.xlu0 %387
        %391 = vset.pattern.permute.xlu0 0
        %392 = vperm.xlu0 %391, %v384
        %v393 = vpop.permute.xlu0 %392
        %vm395 = vcmask 80896
        %v397 = vsel %vm395, %v381, 0
        %v400 = vsel %vm395, %v382, 0
        %v403 = vsel %vm395, %v253, 0
        %v406 = vsel %vm395, %v254, 0
        %v409 = vsel %vm395, %v255, 0
        %v412 = vsel %vm395, %v256, 0
        %v415 = vsel %vm395, %v257, 0
        %v418 = vsel %vm395, %v258, 0
        %v421 = vsel %vm395, %v259, 0
        %v424 = vsel %vm395, %v260, 0
        %v427 = vsel %vm395, %v261, 0
        %v430 = vsel %vm395, %v262, 0
        %v433 = vsel %vm395, %v263, 0
        %v436 = vsel %vm395, %v264, 0
        %v439 = vsel %vm395, %v265, 0
        %v442 = vsel %vm395, %v266, 0
        %v445 = vsel %vm395, %v267, 0
        %v448 = vsel %vm395, %v268, 0
        %v451 = vsel %vm395, %v269, 0
        %v454 = vsel %vm395, %v270, 0
        %v457 = vsel %vm395, %v271, 0
        %v460 = vsel %vm395, %v272, 0
        %v463 = vsel %vm395, %v273, 0
        %v466 = vsel %vm395, %v274, 0
        %v469 = vsel %vm395, %v275, 0
        %v472 = vsel %vm395, %v276, 0
        %v475 = vsel %vm395, %v277, 0
        %v478 = vsel %vm395, %v278, 0
        %v481 = vsel %vm395, %v279, 0
        %v484 = vsel %vm395, %v280, 0
        %v487 = vsel %vm395, %v281, 0
        %v490 = vsel %vm395, %v282, 0
        %v493 = vsel %vm395, %v283, 0
        %v496 = vsel %vm395, %v284, 0
        %v499 = vsel %vm395, %v285, 0
        %v502 = vsel %vm395, %v286, 0
        %v505 = vsel %vm395, %v287, 0
        %v508 = vsel %vm395, %v288, 0
        %v511 = vsel %vm395, %v289, 0
        %v514 = vsel %vm395, %v290, 0
        %v517 = vsel %vm395, %v291, 0
        %v520 = vsel %vm395, %v292, 0
        %v523 = vsel %vm395, %v293, 0
        %v526 = vsel %vm395, %v294, 0
        %v529 = vsel %vm395, %v295, 0
        %v532 = vsel %vm395, %v296, 0
        %v535 = vsel %vm395, %v297, 0
        %v538 = vsel %vm395, %v298, 0
        %v541 = vsel %vm395, %v299, 0
        %v544 = vsel %vm395, %v300, 0
        %v547 = vsel %vm395, %v301, 0
        %v550 = vsel %vm395, %v302, 0
        %v553 = vsel %vm395, %v303, 0
        %v556 = vsel %vm395, %v304, 0
        %v559 = vsel %vm395, %v305, 0
        %v562 = vsel %vm395, %v306, 0
        %v565 = vsel %vm395, %v307, 0
        %v568 = vsel %vm395, %v308, 0
        %v571 = vsel %vm395, %v309, 0
        %v574 = vsel %vm395, %v310, 0
        %v577 = vsel %vm395, %v311, 0
        %v580 = vsel %vm395, %v312, 0
        %v583 = vsel %vm395, %v313, 0
        %v586 = vsel %vm395, %v314, 0
        %v589 = vsel %vm395, %v315, 0
        %v592 = vsel %vm395, %v316, 0
        %v595 = vsel %vm395, %v317, 0
        %v598 = vsel %vm395, %v318, 0
        %v601 = vsel %vm395, %v319, 0
        %v604 = vsel %vm395, %v320, 0
        %v607 = vsel %vm395, %v321, 0
        %v610 = vsel %vm395, %v322, 0
        %v613 = vsel %vm395, %v323, 0
        %v616 = vsel %vm395, %v324, 0
        %v619 = vsel %vm395, %v325, 0
        %v622 = vsel %vm395, %v326, 0
        %v625 = vsel %vm395, %v327, 0
        %v628 = vsel %vm395, %v328, 0
        %v631 = vsel %vm395, %v329, 0
        %v634 = vsel %vm395, %v330, 0
        %v637 = vsel %vm395, %v331, 0
        %v640 = vsel %vm395, %v332, 0
        %v643 = vsel %vm395, %v333, 0
        %v646 = vsel %vm395, %v334, 0
        %v649 = vsel %vm395, %v335, 0
        %v652 = vsel %vm395, %v336, 0
        %v655 = vsel %vm395, %v337, 0
        %v658 = vsel %vm395, %v338, 0
        %v661 = vsel %vm395, %v339, 0
        %v664 = vsel %vm395, %v340, 0
        %v667 = vsel %vm395, %v341, 0
        %v670 = vsel %vm395, %v342, 0
        %v673 = vsel %vm395, %v343, 0
        %v676 = vsel %vm395, %v344, 0
        %v679 = vsel %vm395, %v345, 0
        %v682 = vsel %vm395, %v346, 0
        %v685 = vsel %vm395, %v347, 0
        %v688 = vsel %vm395, %v348, 0
        %v691 = vsel %vm395, %v349, 0
        %v694 = vsel %vm395, %v350, 0
        %v697 = vsel %vm395, %v351, 0
        %v700 = vsel %vm395, %v352, 0
        %v703 = vsel %vm395, %v353, 0
        %v706 = vsel %vm395, %v354, 0
        %v709 = vsel %vm395, %v355, 0
        %v712 = vsel %vm395, %v356, 0
        %v715 = vsel %vm395, %v357, 0
        %v718 = vsel %vm395, %v358, 0
        %v721 = vsel %vm395, %v359, 0
        %v724 = vsel %vm395, %v360, 0
        %v727 = vsel %vm395, %v361, 0
        %v730 = vsel %vm395, %v362, 0
        %v733 = vsel %vm395, %v363, 0
        %v736 = vsel %vm395, %v364, 0
        %v739 = vsel %vm395, %v365, 0
        %v742 = vsel %vm395, %v366, 0
        %v745 = vsel %vm395, %v367, 0
        %v748 = vsel %vm395, %v368, 0
        %v751 = vsel %vm395, %v369, 0
        %v754 = vsel %vm395, %v370, 0
        %v757 = vsel %vm395, %v371, 0
        %v760 = vsel %vm395, %v372, 0
        %v763 = vsel %vm395, %v373, 0
        %v766 = vsel %vm395, %v374, 0
        %v769 = vsel %vm395, %v375, 0
        %v772 = vsel %vm395, %v376, 0
        %v775 = vsel %vm395, %v377, 0
        %v778 = vsel %vm395, %v378, 0
        %v781 = vsel %vm395, %v379, 0
        %v784 = vsel %vm395, %v380, 0
        %786 = vmatpush.xpose.msra.mxu0 %v448
        %787 = vmatpush.xpose.msra.mxu0 %v445
        %788 = vmatpush.xpose.msra.mxu0 %v442
        %789 = vmatpush.xpose.msra.mxu0 %v439
        %790 = vmatpush.xpose.msra.mxu0 %v436
        %791 = vmatpush.xpose.msra.mxu0 %v433
        %792 = vmatpush.xpose.msra.mxu0 %v430
        %793 = vmatpush.xpose.msra.mxu0 %v427
        %794 = vmatpush.xpose.msra.mxu0 %v424
        %795 = vmatpush.xpose.msra.mxu0 %v421
        %796 = vmatpush.xpose.msra.mxu0 %v418
        %797 = vmatpush.xpose.msra.mxu0 %v415
        %798 = vmatpush.xpose.msra.mxu0 %v412
        %799 = vmatpush.xpose.msra.mxu0 %v409
        %800 = vmatpush.xpose.msra.mxu0 %v406
        %801 = vmatpush.xpose.msra.mxu0 %v403
        %802 = vmatmul.f32.gmra.mxu0 %v397
        %v803 = vpop.f32.mrf.mxu0
        %v804 = vadd.f32 %v388, %v803
        %805 = vmatmul.f32.gmra.mxu0 %v400
        %v806 = vpop.f32.mrf.mxu0
        %v807 = vadd.f32 %v393, %v806
        %808 = vdwg.mxu0
        %809 = vmatpush.xpose.msra.mxu0 %v496
        %810 = vmatpush.xpose.msra.mxu0 %v493
        %811 = vmatpush.xpose.msra.mxu0 %v490
        %812 = vmatpush.xpose.msra.mxu0 %v487
        %813 = vmatpush.xpose.msra.mxu0 %v484
        %814 = vmatpush.xpose.msra.mxu0 %v481
        %815 = vmatpush.xpose.msra.mxu0 %v478
        %816 = vmatpush.xpose.msra.mxu0 %v475
        %817 = vmatpush.xpose.msra.mxu0 %v472
        %818 = vmatpush.xpose.msra.mxu0 %v469
        %819 = vmatpush.xpose.msra.mxu0 %v466
        %820 = vmatpush.xpose.msra.mxu0 %v463
        %821 = vmatpush.xpose.msra.mxu0 %v460
        %822 = vmatpush.xpose.msra.mxu0 %v457
        %823 = vmatpush.xpose.msra.mxu0 %v454
        %824 = vmatpush.xpose.msra.mxu0 %v451
        %825 = vmatmul.f32.gmra.mxu0 %v397
        %v826 = vpop.f32.mrf.mxu0
        %v827 = vadd.f32 %v388, %v826
        %828 = vmatmul.f32.gmra.mxu0 %v400
        %v829 = vpop.f32.mrf.mxu0
        %v830 = vadd.f32 %v393, %v829
        %831 = vdwg.mxu0
        %832 = vmatpush.xpose.msra.mxu0 %v544
        %833 = vmatpush.xpose.msra.mxu0 %v541
        %834 = vmatpush.xpose.msra.mxu0 %v538
        %835 = vmatpush.xpose.msra.mxu0 %v535
        %836 = vmatpush.xpose.msra.mxu0 %v532
        %837 = vmatpush.xpose.msra.mxu0 %v529
        %838 = vmatpush.xpose.msra.mxu0 %v526
        %839 = vmatpush.xpose.msra.mxu0 %v523
        %840 = vmatpush.xpose.msra.mxu0 %v520
        %841 = vmatpush.xpose.msra.mxu0 %v517
        %842 = vmatpush.xpose.msra.mxu0 %v514
        %843 = vmatpush.xpose.msra.mxu0 %v511
        %844 = vmatpush.xpose.msra.mxu0 %v508
        %845 = vmatpush.xpose.msra.mxu0 %v505
        %846 = vmatpush.xpose.msra.mxu0 %v502
        %847 = vmatpush.xpose.msra.mxu0 %v499
        %848 = vmatmul.f32.gmra.mxu0 %v397
        %v849 = vpop.f32.mrf.mxu0
        %v850 = vadd.f32 %v388, %v849
        %851 = vmatmul.f32.gmra.mxu0 %v400
        %v852 = vpop.f32.mrf.mxu0
        %v853 = vadd.f32 %v393, %v852
        %854 = vdwg.mxu0
        %855 = vmatpush.xpose.msra.mxu0 %v592
        %856 = vmatpush.xpose.msra.mxu0 %v589
        %857 = vmatpush.xpose.msra.mxu0 %v586
        %858 = vmatpush.xpose.msra.mxu0 %v583
        %859 = vmatpush.xpose.msra.mxu0 %v580
        %860 = vmatpush.xpose.msra.mxu0 %v577
        %861 = vmatpush.xpose.msra.mxu0 %v574
        %862 = vmatpush.xpose.msra.mxu0 %v571
        %863 = vmatpush.xpose.msra.mxu0 %v568
        %864 = vmatpush.xpose.msra.mxu0 %v565
        %865 = vmatpush.xpose.msra.mxu0 %v562
        %866 = vmatpush.xpose.msra.mxu0 %v559
        %867 = vmatpush.xpose.msra.mxu0 %v556
        %868 = vmatpush.xpose.msra.mxu0 %v553
        %869 = vmatpush.xpose.msra.mxu0 %v550
        %870 = vmatpush.xpose.msra.mxu0 %v547
        %871 = vmatmul.f32.gmra.mxu0 %v397
        %v872 = vpop.f32.mrf.mxu0
        %v873 = vadd.f32 %v388, %v872
        %874 = vmatmul.f32.gmra.mxu0 %v400
        %v875 = vpop.f32.mrf.mxu0
        %v876 = vadd.f32 %v393, %v875
        %877 = vdwg.mxu0
        %878 = vmatpush.xpose.msra.mxu0 %v640
        %879 = vmatpush.xpose.msra.mxu0 %v637
        %880 = vmatpush.xpose.msra.mxu0 %v634
        %881 = vmatpush.xpose.msra.mxu0 %v631
        %882 = vmatpush.xpose.msra.mxu0 %v628
        %883 = vmatpush.xpose.msra.mxu0 %v625
        %884 = vmatpush.xpose.msra.mxu0 %v622
        %885 = vmatpush.xpose.msra.mxu0 %v619
        %886 = vmatpush.xpose.msra.mxu0 %v616
        %887 = vmatpush.xpose.msra.mxu0 %v613
        %888 = vmatpush.xpose.msra.mxu0 %v610
        %889 = vmatpush.xpose.msra.mxu0 %v607
        %890 = vmatpush.xpose.msra.mxu0 %v604
        %891 = vmatpush.xpose.msra.mxu0 %v601
        %892 = vmatpush.xpose.msra.mxu0 %v598
        %893 = vmatpush.xpose.msra.mxu0 %v595
        %894 = vmatmul.f32.gmra.mxu0 %v397
        %v895 = vpop.f32.mrf.mxu0
        %v896 = vadd.f32 %v388, %v895
        %897 = vmatmul.f32.gmra.mxu0 %v400
        %v898 = vpop.f32.mrf.mxu0
        %v899 = vadd.f32 %v393, %v898
        %900 = vdwg.mxu0
        %901 = vmatpush.xpose.msra.mxu0 %v688
        %902 = vmatpush.xpose.msra.mxu0 %v685
        %903 = vmatpush.xpose.msra.mxu0 %v682
        %904 = vmatpush.xpose.msra.mxu0 %v679
        %905 = vmatpush.xpose.msra.mxu0 %v676
        %906 = vmatpush.xpose.msra.mxu0 %v673
        %907 = vmatpush.xpose.msra.mxu0 %v670
        %908 = vmatpush.xpose.msra.mxu0 %v667
        %909 = vmatpush.xpose.msra.mxu0 %v664
        %910 = vmatpush.xpose.msra.mxu0 %v661
        %911 = vmatpush.xpose.msra.mxu0 %v658
        %912 = vmatpush.xpose.msra.mxu0 %v655
        %913 = vmatpush.xpose.msra.mxu0 %v652
        %914 = vmatpush.xpose.msra.mxu0 %v649
        %915 = vmatpush.xpose.msra.mxu0 %v646
        %916 = vmatpush.xpose.msra.mxu0 %v643
        %917 = vmatmul.f32.gmra.mxu0 %v397
        %v918 = vpop.f32.mrf.mxu0
        %v919 = vadd.f32 %v388, %v918
        %920 = vmatmul.f32.gmra.mxu0 %v400
        %v921 = vpop.f32.mrf.mxu0
        %v922 = vadd.f32 %v393, %v921
        %923 = vdwg.mxu0
        %924 = vmatpush.xpose.msra.mxu0 %v736
        %925 = vmatpush.xpose.msra.mxu0 %v733
        %926 = vmatpush.xpose.msra.mxu0 %v730
        %927 = vmatpush.xpose.msra.mxu0 %v727
        %928 = vmatpush.xpose.msra.mxu0 %v724
        %929 = vmatpush.xpose.msra.mxu0 %v721
        %930 = vmatpush.xpose.msra.mxu0 %v718
        %931 = vmatpush.xpose.msra.mxu0 %v715
        %932 = vmatpush.xpose.msra.mxu0 %v712
        %933 = vmatpush.xpose.msra.mxu0 %v709
        %934 = vmatpush.xpose.msra.mxu0 %v706
        %935 = vmatpush.xpose.msra.mxu0 %v703
        %936 = vmatpush.xpose.msra.mxu0 %v700
        %937 = vmatpush.xpose.msra.mxu0 %v697
        %938 = vmatpush.xpose.msra.mxu0 %v694
        %939 = vmatpush.xpose.msra.mxu0 %v691
        %940 = vmatmul.f32.gmra.mxu0 %v397
        %v941 = vpop.f32.mrf.mxu0
        %v942 = vadd.f32 %v388, %v941
        %943 = vmatmul.f32.gmra.mxu0 %v400
        %v944 = vpop.f32.mrf.mxu0
        %v945 = vadd.f32 %v393, %v944
        %946 = vdwg.mxu0
        %947 = vmatpush.xpose.msra.mxu0 %v784
        %948 = vmatpush.xpose.msra.mxu0 %v781
        %949 = vmatpush.xpose.msra.mxu0 %v778
        %950 = vmatpush.xpose.msra.mxu0 %v775
        %951 = vmatpush.xpose.msra.mxu0 %v772
        %952 = vmatpush.xpose.msra.mxu0 %v769
        %953 = vmatpush.xpose.msra.mxu0 %v766
        %954 = vmatpush.xpose.msra.mxu0 %v763
        %955 = vmatpush.xpose.msra.mxu0 %v760
        %956 = vmatpush.xpose.msra.mxu0 %v757
        %957 = vmatpush.xpose.msra.mxu0 %v754
        %958 = vmatpush.xpose.msra.mxu0 %v751
        %959 = vmatpush.xpose.msra.mxu0 %v748
        %960 = vmatpush.xpose.msra.mxu0 %v745
        %961 = vmatpush.xpose.msra.mxu0 %v742
        %962 = vmatpush.xpose.msra.mxu0 %v739
        %963 = vmatmul.f32.gmra.mxu0 %v397
        %v964 = vpop.f32.mrf.mxu0
        %v965 = vadd.f32 %v388, %v964
        %966 = vmatmul.f32.gmra.mxu0 %v400
        %v967 = vpop.f32.mrf.mxu0
        %v968 = vadd.f32 %v393, %v967
        %969 = vdwg.mxu0
        %v970 = vmax.f32 %v804, 0.0
        %v971 = vmax.f32 %v827, 0.0
        %v972 = vmax.f32 %v850, 0.0
        %v973 = vmax.f32 %v873, 0.0
        %v974 = vmax.f32 %v896, 0.0
        %v975 = vmax.f32 %v919, 0.0
        %v976 = vmax.f32 %v942, 0.0
        %v977 = vmax.f32 %v965, 0.0
        %v978 = vmax.f32 %v807, 0.0
        %v979 = vmax.f32 %v830, 0.0
        %v980 = vmax.f32 %v853, 0.0
        %v981 = vmax.f32 %v876, 0.0
        %v982 = vmax.f32 %v899, 0.0
        %v983 = vmax.f32 %v922, 0.0
        %v984 = vmax.f32 %v945, 0.0
        %v985 = vmax.f32 %v968, 0.0
        %v986 = vld [vmem:[%s3] sm:$0xff]
        %v987 = vld [vmem:[%s3 + $0x8] sm:$0xff]
        %vm988 = vcmask 130048
        %v990 = vsel %vm988, %v986, 0
        %v993 = vsel %vm988, %v987, 0
        %995 = vmatpush.msra.mxu0 0.0
        %996 = vmatpush.msra.mxu0 0.0
        %997 = vmatpush.msra.mxu0 0.0
        %998 = vmatpush.msra.mxu0 0.0
        %999 = vmatpush.msra.mxu0 0.0
        %1000 = vmatpush.msra.mxu0 0.0
        %1001 = vmatpush.msra.mxu0 0.0
        %1002 = vmatpush.msra.mxu0 0.0
        %1003 = vmatpush.msra.mxu0 0.0
        %1004 = vmatpush.msra.mxu0 0.0
        %1005 = vmatpush.msra.mxu0 0.0
        %1006 = vmatpush.msra.mxu0 0.0
        %1007 = vmatpush.msra.mxu0 0.0
        %1008 = vmatpush.msra.mxu0 0.0
        %1009 = vmatpush.msra.mxu0 %v978
        %1010 = vmatpush.msra.mxu0 %v970
        %1011 = vmatmul.f32.gmra.mxu0 %v990
        %v1012 = vpop.f32.mrf.mxu0
        %v1013 = vadd.f32 0.0, %v1012
        %1014 = vmatmul.f32.gmra.mxu0 %v993
        %v1015 = vpop.f32.mrf.mxu0
        %v1016 = vadd.f32 0.0, %v1015
        %1017 = vdwg.mxu0
        %1018 = vmatpush.msra.mxu0 0.0
        %1019 = vmatpush.msra.mxu0 0.0
        %1020 = vmatpush.msra.mxu0 0.0
        %1021 = vmatpush.msra.mxu0 0.0
        %1022 = vmatpush.msra.mxu0 0.0
        %1023 = vmatpush.msra.mxu0 0.0
        %1024 = vmatpush.msra.mxu0 0.0
        %1025 = vmatpush.msra.mxu0 0.0
        %1026 = vmatpush.msra.mxu0 0.0
        %1027 = vmatpush.msra.mxu0 0.0
        %1028 = vmatpush.msra.mxu0 0.0
        %1029 = vmatpush.msra.mxu0 0.0
        %1030 = vmatpush.msra.mxu0 0.0
        %1031 = vmatpush.msra.mxu0 0.0
        %1032 = vmatpush.msra.mxu0 %v979
        %1033 = vmatpush.msra.mxu0 %v971
        %1034 = vmatmul.f32.gmra.mxu0 %v990
        %v1035 = vpop.f32.mrf.mxu0
        %v1036 = vadd.f32 0.0, %v1035
        %1037 = vmatmul.f32.gmra.mxu0 %v993
        %v1038 = vpop.f32.mrf.mxu0
        %v1039 = vadd.f32 0.0, %v1038
        %1040 = vdwg.mxu0
        %1041 = vmatpush.msra.mxu0 0.0
        %1042 = vmatpush.msra.mxu0 0.0
        %1043 = vmatpush.msra.mxu0 0.0
        %1044 = vmatpush.msra.mxu0 0.0
        %1045 = vmatpush.msra.mxu0 0.0
        %1046 = vmatpush.msra.mxu0 0.0
        %1047 = vmatpush.msra.mxu0 0.0
        %1048 = vmatpush.msra.mxu0 0.0
        %1049 = vmatpush.msra.mxu0 0.0
        %1050 = vmatpush.msra.mxu0 0.0
        %1051 = vmatpush.msra.mxu0 0.0
        %1052 = vmatpush.msra.mxu0 0.0
        %1053 = vmatpush.msra.mxu0 0.0
        %1054 = vmatpush.msra.mxu0 0.0
        %1055 = vmatpush.msra.mxu0 %v980
        %1056 = vmatpush.msra.mxu0 %v972
        %1057 = vmatmul.f32.gmra.mxu0 %v990
        %v1058 = vpop.f32.mrf.mxu0
        %v1059 = vadd.f32 0.0, %v1058
        %1060 = vmatmul.f32.gmra.mxu0 %v993
        %v1061 = vpop.f32.mrf.mxu0
        %v1062 = vadd.f32 0.0, %v1061
        %1063 = vdwg.mxu0
        %1064 = vmatpush.msra.mxu0 0.0
        %1065 = vmatpush.msra.mxu0 0.0
        %1066 = vmatpush.msra.mxu0 0.0
        %1067 = vmatpush.msra.mxu0 0.0
        %1068 = vmatpush.msra.mxu0 0.0
        %1069 = vmatpush.msra.mxu0 0.0
        %1070 = vmatpush.msra.mxu0 0.0
        %1071 = vmatpush.msra.mxu0 0.0
        %1072 = vmatpush.msra.mxu0 0.0
        %1073 = vmatpush.msra.mxu0 0.0
        %1074 = vmatpush.msra.mxu0 0.0
        %1075 = vmatpush.msra.mxu0 0.0
        %1076 = vmatpush.msra.mxu0 0.0
        %1077 = vmatpush.msra.mxu0 0.0
        %1078 = vmatpush.msra.mxu0 %v981
        %1079 = vmatpush.msra.mxu0 %v973
        %1080 = vmatmul.f32.gmra.mxu0 %v990
        %v1081 = vpop.f32.mrf.mxu0
        %v1082 = vadd.f32 0.0, %v1081
        %1083 = vmatmul.f32.gmra.mxu0 %v993
        %v1084 = vpop.f32.mrf.mxu0
        %v1085 = vadd.f32 0.0, %v1084
        %1086 = vdwg.mxu0
        %1087 = vmatpush.msra.mxu0 0.0
        %1088 = vmatpush.msra.mxu0 0.0
        %1089 = vmatpush.msra.mxu0 0.0
        %1090 = vmatpush.msra.mxu0 0.0
        %1091 = vmatpush.msra.mxu0 0.0
        %1092 = vmatpush.msra.mxu0 0.0
        %1093 = vmatpush.msra.mxu0 0.0
        %1094 = vmatpush.msra.mxu0 0.0
        %1095 = vmatpush.msra.mxu0 0.0
        %1096 = vmatpush.msra.mxu0 0.0
        %1097 = vmatpush.msra.mxu0 0.0
        %1098 = vmatpush.msra.mxu0 0.0
        %1099 = vmatpush.msra.mxu0 0.0
        %1100 = vmatpush.msra.mxu0 0.0
        %1101 = vmatpush.msra.mxu0 %v982
        %1102 = vmatpush.msra.mxu0 %v974
        %1103 = vmatmul.f32.gmra.mxu0 %v990
        %v1104 = vpop.f32.mrf.mxu0
        %v1105 = vadd.f32 0.0, %v1104
        %1106 = vmatmul.f32.gmra.mxu0 %v993
        %v1107 = vpop.f32.mrf.mxu0
        %v1108 = vadd.f32 0.0, %v1107
        %1109 = vdwg.mxu0
        %1110 = vmatpush.msra.mxu0 0.0
        %1111 = vmatpush.msra.mxu0 0.0
        %1112 = vmatpush.msra.mxu0 0.0
        %1113 = vmatpush.msra.mxu0 0.0
        %1114 = vmatpush.msra.mxu0 0.0
        %1115 = vmatpush.msra.mxu0 0.0
        %1116 = vmatpush.msra.mxu0 0.0
        %1117 = vmatpush.msra.mxu0 0.0
        %1118 = vmatpush.msra.mxu0 0.0
        %1119 = vmatpush.msra.mxu0 0.0
        %1120 = vmatpush.msra.mxu0 0.0
        %1121 = vmatpush.msra.mxu0 0.0
        %1122 = vmatpush.msra.mxu0 0.0
        %1123 = vmatpush.msra.mxu0 0.0
        %1124 = vmatpush.msra.mxu0 %v983
        %1125 = vmatpush.msra.mxu0 %v975
        %1126 = vmatmul.f32.gmra.mxu0 %v990
        %v1127 = vpop.f32.mrf.mxu0
        %v1128 = vadd.f32 0.0, %v1127
        %1129 = vmatmul.f32.gmra.mxu0 %v993
        %v1130 = vpop.f32.mrf.mxu0
        %v1131 = vadd.f32 0.0, %v1130
        %1132 = vdwg.mxu0
        %1133 = vmatpush.msra.mxu0 0.0
        %1134 = vmatpush.msra.mxu0 0.0
        %1135 = vmatpush.msra.mxu0 0.0
        %1136 = vmatpush.msra.mxu0 0.0
        %1137 = vmatpush.msra.mxu0 0.0
        %1138 = vmatpush.msra.mxu0 0.0
        %1139 = vmatpush.msra.mxu0 0.0
        %1140 = vmatpush.msra.mxu0 0.0
        %1141 = vmatpush.msra.mxu0 0.0
        %1142 = vmatpush.msra.mxu0 0.0
        %1143 = vmatpush.msra.mxu0 0.0
        %1144 = vmatpush.msra.mxu0 0.0
        %1145 = vmatpush.msra.mxu0 0.0
        %1146 = vmatpush.msra.mxu0 0.0
        %1147 = vmatpush.msra.mxu0 %v984
        %1148 = vmatpush.msra.mxu0 %v976
        %1149 = vmatmul.f32.gmra.mxu0 %v990
        %v1150 = vpop.f32.mrf.mxu0
        %v1151 = vadd.f32 0.0, %v1150
        %1152 = vmatmul.f32.gmra.mxu0 %v993
        %v1153 = vpop.f32.mrf.mxu0
        %v1154 = vadd.f32 0.0, %v1153
        %1155 = vdwg.mxu0
        %1156 = vmatpush.msra.mxu0 0.0
        %1157 = vmatpush.msra.mxu0 0.0
        %1158 = vmatpush.msra.mxu0 0.0
        %1159 = vmatpush.msra.mxu0 0.0
        %1160 = vmatpush.msra.mxu0 0.0
        %1161 = vmatpush.msra.mxu0 0.0
        %1162 = vmatpush.msra.mxu0 0.0
        %1163 = vmatpush.msra.mxu0 0.0
        %1164 = vmatpush.msra.mxu0 0.0
        %1165 = vmatpush.msra.mxu0 0.0
        %1166 = vmatpush.msra.mxu0 0.0
        %1167 = vmatpush.msra.mxu0 0.0
        %1168 = vmatpush.msra.mxu0 0.0
        %1169 = vmatpush.msra.mxu0 0.0
        %1170 = vmatpush.msra.mxu0 %v985
        %1171 = vmatpush.msra.mxu0 %v977
        %1172 = vmatmul.f32.gmra.mxu0 %v990
        %v1173 = vpop.f32.mrf.mxu0
        %v1174 = vadd.f32 0.0, %v1173
        %1175 = vmatmul.f32.gmra.mxu0 %v993
        %v1176 = vpop.f32.mrf.mxu0
        %v1177 = vadd.f32 0.0, %v1176
        %1178 = vdwg.mxu0
        %v1179 = vmax.f32 %v1013, 0.0
        %v1180 = vmax.f32 %v1036, 0.0
        %v1181 = vmax.f32 %v1059, 0.0
        %v1182 = vmax.f32 %v1082, 0.0
        %v1183 = vmax.f32 %v1105, 0.0
        %v1184 = vmax.f32 %v1128, 0.0
        %v1185 = vmax.f32 %v1151, 0.0
        %v1186 = vmax.f32 %v1174, 0.0
        %v1187 = vmax.f32 %v1016, 0.0
        %v1188 = vmax.f32 %v1039, 0.0
        %v1189 = vmax.f32 %v1062, 0.0
        %v1190 = vmax.f32 %v1085, 0.0
        %v1191 = vmax.f32 %v1108, 0.0
        %v1192 = vmax.f32 %v1131, 0.0
        %v1193 = vmax.f32 %v1154, 0.0
        %v1194 = vmax.f32 %v1177, 0.0
        %v1195 = vld [vmem:[%s4] sm:$0xff]
        %v1196 = vld [vmem:[%s4 + $0x8] sm:$0xff]
        %v1198 = vsel %vm988, %v1195, 0
        %v1201 = vsel %vm988, %v1196, 0
        %1203 = vmatpush.msra.mxu0 0.0
        %1204 = vmatpush.msra.mxu0 0.0
        %1205 = vmatpush.msra.mxu0 0.0
        %1206 = vmatpush.msra.mxu0 0.0
        %1207 = vmatpush.msra.mxu0 0.0
        %1208 = vmatpush.msra.mxu0 0.0
        %1209 = vmatpush.msra.mxu0 0.0
        %1210 = vmatpush.msra.mxu0 0.0
        %1211 = vmatpush.msra.mxu0 0.0
        %1212 = vmatpush.msra.mxu0 0.0
        %1213 = vmatpush.msra.mxu0 0.0
        %1214 = vmatpush.msra.mxu0 0.0
        %1215 = vmatpush.msra.mxu0 0.0
        %1216 = vmatpush.msra.mxu0 0.0
        %1217 = vmatpush.msra.mxu0 %v1187
        %1218 = vmatpush.msra.mxu0 %v1179
        %1219 = vmatmul.f32.gmra.mxu0 %v1198
        %v1220 = vpop.f32.mrf.mxu0
        %v1221 = vadd.f32 0.0, %v1220
        %1222 = vmatmul.f32.gmra.mxu0 %v1201
        %v1223 = vpop.f32.mrf.mxu0
        %v1224 = vadd.f32 0.0, %v1223
        %1225 = vdwg.mxu0
        %1226 = vmatpush.msra.mxu0 0.0
        %1227 = vmatpush.msra.mxu0 0.0
        %1228 = vmatpush.msra.mxu0 0.0
        %1229 = vmatpush.msra.mxu0 0.0
        %1230 = vmatpush.msra.mxu0 0.0
        %1231 = vmatpush.msra.mxu0 0.0
        %1232 = vmatpush.msra.mxu0 0.0
        %1233 = vmatpush.msra.mxu0 0.0
        %1234 = vmatpush.msra.mxu0 0.0
        %1235 = vmatpush.msra.mxu0 0.0
        %1236 = vmatpush.msra.mxu0 0.0
        %1237 = vmatpush.msra.mxu0 0.0
        %1238 = vmatpush.msra.mxu0 0.0
        %1239 = vmatpush.msra.mxu0 0.0
        %1240 = vmatpush.msra.mxu0 %v1188
        %1241 = vmatpush.msra.mxu0 %v1180
        %1242 = vmatmul.f32.gmra.mxu0 %v1198
        %v1243 = vpop.f32.mrf.mxu0
        %v1244 = vadd.f32 0.0, %v1243
        %1245 = vmatmul.f32.gmra.mxu0 %v1201
        %v1246 = vpop.f32.mrf.mxu0
        %v1247 = vadd.f32 0.0, %v1246
        %1248 = vdwg.mxu0
        %1249 = vmatpush.msra.mxu0 0.0
        %1250 = vmatpush.msra.mxu0 0.0
        %1251 = vmatpush.msra.mxu0 0.0
        %1252 = vmatpush.msra.mxu0 0.0
        %1253 = vmatpush.msra.mxu0 0.0
        %1254 = vmatpush.msra.mxu0 0.0
        %1255 = vmatpush.msra.mxu0 0.0
        %1256 = vmatpush.msra.mxu0 0.0
        %1257 = vmatpush.msra.mxu0 0.0
        %1258 = vmatpush.msra.mxu0 0.0
        %1259 = vmatpush.msra.mxu0 0.0
        %1260 = vmatpush.msra.mxu0 0.0
        %1261 = vmatpush.msra.mxu0 0.0
        %1262 = vmatpush.msra.mxu0 0.0
        %1263 = vmatpush.msra.mxu0 %v1189
        %1264 = vmatpush.msra.mxu0 %v1181
        %1265 = vmatmul.f32.gmra.mxu0 %v1198
        %v1266 = vpop.f32.mrf.mxu0
        %v1267 = vadd.f32 0.0, %v1266
        %1268 = vmatmul.f32.gmra.mxu0 %v1201
        %v1269 = vpop.f32.mrf.mxu0
        %v1270 = vadd.f32 0.0, %v1269
        %1271 = vdwg.mxu0
        %1272 = vmatpush.msra.mxu0 0.0
        %1273 = vmatpush.msra.mxu0 0.0
        %1274 = vmatpush.msra.mxu0 0.0
        %1275 = vmatpush.msra.mxu0 0.0
        %1276 = vmatpush.msra.mxu0 0.0
        %1277 = vmatpush.msra.mxu0 0.0
        %1278 = vmatpush.msra.mxu0 0.0
        %1279 = vmatpush.msra.mxu0 0.0
        %1280 = vmatpush.msra.mxu0 0.0
        %1281 = vmatpush.msra.mxu0 0.0
        %1282 = vmatpush.msra.mxu0 0.0
        %1283 = vmatpush.msra.mxu0 0.0
        %1284 = vmatpush.msra.mxu0 0.0
        %1285 = vmatpush.msra.mxu0 0.0
        %1286 = vmatpush.msra.mxu0 %v1190
        %1287 = vmatpush.msra.mxu0 %v1182
        %1288 = vmatmul.f32.gmra.mxu0 %v1198
        %v1289 = vpop.f32.mrf.mxu0
        %v1290 = vadd.f32 0.0, %v1289
        %1291 = vmatmul.f32.gmra.mxu0 %v1201
        %v1292 = vpop.f32.mrf.mxu0
        %v1293 = vadd.f32 0.0, %v1292
        %1294 = vdwg.mxu0
        %1295 = vmatpush.msra.mxu0 0.0
        %1296 = vmatpush.msra.mxu0 0.0
        %1297 = vmatpush.msra.mxu0 0.0
        %1298 = vmatpush.msra.mxu0 0.0
        %1299 = vmatpush.msra.mxu0 0.0
        %1300 = vmatpush.msra.mxu0 0.0
        %1301 = vmatpush.msra.mxu0 0.0
        %1302 = vmatpush.msra.mxu0 0.0
        %1303 = vmatpush.msra.mxu0 0.0
        %1304 = vmatpush.msra.mxu0 0.0
        %1305 = vmatpush.msra.mxu0 0.0
        %1306 = vmatpush.msra.mxu0 0.0
        %1307 = vmatpush.msra.mxu0 0.0
        %1308 = vmatpush.msra.mxu0 0.0
        %1309 = vmatpush.msra.mxu0 %v1191
        %1310 = vmatpush.msra.mxu0 %v1183
        %1311 = vmatmul.f32.gmra.mxu0 %v1198
        %v1312 = vpop.f32.mrf.mxu0
        %v1313 = vadd.f32 0.0, %v1312
        %1314 = vmatmul.f32.gmra.mxu0 %v1201
        %v1315 = vpop.f32.mrf.mxu0
        %v1316 = vadd.f32 0.0, %v1315
        %1317 = vdwg.mxu0
        %1318 = vmatpush.msra.mxu0 0.0
        %1319 = vmatpush.msra.mxu0 0.0
        %1320 = vmatpush.msra.mxu0 0.0
        %1321 = vmatpush.msra.mxu0 0.0
        %1322 = vmatpush.msra.mxu0 0.0
        %1323 = vmatpush.msra.mxu0 0.0
        %1324 = vmatpush.msra.mxu0 0.0
        %1325 = vmatpush.msra.mxu0 0.0
        %1326 = vmatpush.msra.mxu0 0.0
        %1327 = vmatpush.msra.mxu0 0.0
        %1328 = vmatpush.msra.mxu0 0.0
        %1329 = vmatpush.msra.mxu0 0.0
        %1330 = vmatpush.msra.mxu0 0.0
        %1331 = vmatpush.msra.mxu0 0.0
        %1332 = vmatpush.msra.mxu0 %v1192
        %1333 = vmatpush.msra.mxu0 %v1184
        %1334 = vmatmul.f32.gmra.mxu0 %v1198
        %v1335 = vpop.f32.mrf.mxu0
        %v1336 = vadd.f32 0.0, %v1335
        %1337 = vmatmul.f32.gmra.mxu0 %v1201
        %v1338 = vpop.f32.mrf.mxu0
        %v1339 = vadd.f32 0.0, %v1338
        %1340 = vdwg.mxu0
        %1341 = vmatpush.msra.mxu0 0.0
        %1342 = vmatpush.msra.mxu0 0.0
        %1343 = vmatpush.msra.mxu0 0.0
        %1344 = vmatpush.msra.mxu0 0.0
        %1345 = vmatpush.msra.mxu0 0.0
        %1346 = vmatpush.msra.mxu0 0.0
        %1347 = vmatpush.msra.mxu0 0.0
        %1348 = vmatpush.msra.mxu0 0.0
        %1349 = vmatpush.msra.mxu0 0.0
        %1350 = vmatpush.msra.mxu0 0.0
        %1351 = vmatpush.msra.mxu0 0.0
        %1352 = vmatpush.msra.mxu0 0.0
        %1353 = vmatpush.msra.mxu0 0.0
        %1354 = vmatpush.msra.mxu0 0.0
        %1355 = vmatpush.msra.mxu0 %v1193
        %1356 = vmatpush.msra.mxu0 %v1185
        %1357 = vmatmul.f32.gmra.mxu0 %v1198
        %v1358 = vpop.f32.mrf.mxu0
        %v1359 = vadd.f32 0.0, %v1358
        %1360 = vmatmul.f32.gmra.mxu0 %v1201
        %v1361 = vpop.f32.mrf.mxu0
        %v1362 = vadd.f32 0.0, %v1361
        %1363 = vdwg.mxu0
        %1364 = vmatpush.msra.mxu0 0.0
        %1365 = vmatpush.msra.mxu0 0.0
        %1366 = vmatpush.msra.mxu0 0.0
        %1367 = vmatpush.msra.mxu0 0.0
        %1368 = vmatpush.msra.mxu0 0.0
        %1369 = vmatpush.msra.mxu0 0.0
        %1370 = vmatpush.msra.mxu0 0.0
        %1371 = vmatpush.msra.mxu0 0.0
        %1372 = vmatpush.msra.mxu0 0.0
        %1373 = vmatpush.msra.mxu0 0.0
        %1374 = vmatpush.msra.mxu0 0.0
        %1375 = vmatpush.msra.mxu0 0.0
        %1376 = vmatpush.msra.mxu0 0.0
        %1377 = vmatpush.msra.mxu0 0.0
        %1378 = vmatpush.msra.mxu0 %v1194
        %1379 = vmatpush.msra.mxu0 %v1186
        %1380 = vmatmul.f32.gmra.mxu0 %v1198
        %v1381 = vpop.f32.mrf.mxu0
        %v1382 = vadd.f32 0.0, %v1381
        %1383 = vmatmul.f32.gmra.mxu0 %v1201
        %v1384 = vpop.f32.mrf.mxu0
        %v1385 = vadd.f32 0.0, %v1384
        %1386 = vdwg.mxu0
        %v1387 = vmax.f32 %v1221, 0.0
        %v1388 = vmax.f32 %v1244, 0.0
        %v1389 = vmax.f32 %v1267, 0.0
        %v1390 = vmax.f32 %v1290, 0.0
        %v1391 = vmax.f32 %v1313, 0.0
        %v1392 = vmax.f32 %v1336, 0.0
        %v1393 = vmax.f32 %v1359, 0.0
        %v1394 = vmax.f32 %v1382, 0.0
        %v1395 = vmax.f32 %v1224, 0.0
        %v1396 = vmax.f32 %v1247, 0.0
        %v1397 = vmax.f32 %v1270, 0.0
        %v1398 = vmax.f32 %v1293, 0.0
        %v1399 = vmax.f32 %v1316, 0.0
        %v1400 = vmax.f32 %v1339, 0.0
        %v1401 = vmax.f32 %v1362, 0.0
        %v1402 = vmax.f32 %v1385, 0.0
        %v1403 = vld [vmem:[%s5] sm:$0x1]
        %v1405 = vsel %vm988, %v1403, 0
        %1407 = vmatpush.msra.mxu0 0.0
        %1408 = vmatpush.msra.mxu0 0.0
        %1409 = vmatpush.msra.mxu0 0.0
        %1410 = vmatpush.msra.mxu0 0.0
        %1411 = vmatpush.msra.mxu0 0.0
        %1412 = vmatpush.msra.mxu0 0.0
        %1413 = vmatpush.msra.mxu0 0.0
        %1414 = vmatpush.msra.mxu0 0.0
        %1415 = vmatpush.msra.mxu0 0.0
        %1416 = vmatpush.msra.mxu0 0.0
        %1417 = vmatpush.msra.mxu0 0.0
        %1418 = vmatpush.msra.mxu0 0.0
        %1419 = vmatpush.msra.mxu0 0.0
        %1420 = vmatpush.msra.mxu0 0.0
        %1421 = vmatpush.msra.mxu0 %v1395
        %1422 = vmatpush.msra.mxu0 %v1387
        %1423 = vmatmul.f32.gmra.mxu0 %v1405
        %v1424 = vpop.f32.mrf.mxu0
        %v1425 = vadd.f32 0.0, %v1424
        %1426 = vdwg.mxu0
        %1427 = vmatpush.msra.mxu0 0.0
        %1428 = vmatpush.msra.mxu0 0.0
        %1429 = vmatpush.msra.mxu0 0.0
        %1430 = vmatpush.msra.mxu0 0.0
        %1431 = vmatpush.msra.mxu0 0.0
        %1432 = vmatpush.msra.mxu0 0.0
        %1433 = vmatpush.msra.mxu0 0.0
        %1434 = vmatpush.msra.mxu0 0.0
        %1435 = vmatpush.msra.mxu0 0.0
        %1436 = vmatpush.msra.mxu0 0.0
        %1437 = vmatpush.msra.mxu0 0.0
        %1438 = vmatpush.msra.mxu0 0.0
        %1439 = vmatpush.msra.mxu0 0.0
        %1440 = vmatpush.msra.mxu0 0.0
        %1441 = vmatpush.msra.mxu0 %v1396
        %1442 = vmatpush.msra.mxu0 %v1388
        %1443 = vmatmul.f32.gmra.mxu0 %v1405
        %v1444 = vpop.f32.mrf.mxu0
        %v1445 = vadd.f32 0.0, %v1444
        %1446 = vdwg.mxu0
        %1447 = vmatpush.msra.mxu0 0.0
        %1448 = vmatpush.msra.mxu0 0.0
        %1449 = vmatpush.msra.mxu0 0.0
        %1450 = vmatpush.msra.mxu0 0.0
        %1451 = vmatpush.msra.mxu0 0.0
        %1452 = vmatpush.msra.mxu0 0.0
        %1453 = vmatpush.msra.mxu0 0.0
        %1454 = vmatpush.msra.mxu0 0.0
        %1455 = vmatpush.msra.mxu0 0.0
        %1456 = vmatpush.msra.mxu0 0.0
        %1457 = vmatpush.msra.mxu0 0.0
        %1458 = vmatpush.msra.mxu0 0.0
        %1459 = vmatpush.msra.mxu0 0.0
        %1460 = vmatpush.msra.mxu0 0.0
        %1461 = vmatpush.msra.mxu0 %v1397
        %1462 = vmatpush.msra.mxu0 %v1389
        %1463 = vmatmul.f32.gmra.mxu0 %v1405
        %v1464 = vpop.f32.mrf.mxu0
        %v1465 = vadd.f32 0.0, %v1464
        %1466 = vdwg.mxu0
        %1467 = vmatpush.msra.mxu0 0.0
        %1468 = vmatpush.msra.mxu0 0.0
        %1469 = vmatpush.msra.mxu0 0.0
        %1470 = vmatpush.msra.mxu0 0.0
        %1471 = vmatpush.msra.mxu0 0.0
        %1472 = vmatpush.msra.mxu0 0.0
        %1473 = vmatpush.msra.mxu0 0.0
        %1474 = vmatpush.msra.mxu0 0.0
        %1475 = vmatpush.msra.mxu0 0.0
        %1476 = vmatpush.msra.mxu0 0.0
        %1477 = vmatpush.msra.mxu0 0.0
        %1478 = vmatpush.msra.mxu0 0.0
        %1479 = vmatpush.msra.mxu0 0.0
        %1480 = vmatpush.msra.mxu0 0.0
        %1481 = vmatpush.msra.mxu0 %v1398
        %1482 = vmatpush.msra.mxu0 %v1390
        %1483 = vmatmul.f32.gmra.mxu0 %v1405
        %v1484 = vpop.f32.mrf.mxu0
        %v1485 = vadd.f32 0.0, %v1484
        %1486 = vdwg.mxu0
        %1487 = vmatpush.msra.mxu0 0.0
        %1488 = vmatpush.msra.mxu0 0.0
        %1489 = vmatpush.msra.mxu0 0.0
        %1490 = vmatpush.msra.mxu0 0.0
        %1491 = vmatpush.msra.mxu0 0.0
        %1492 = vmatpush.msra.mxu0 0.0
        %1493 = vmatpush.msra.mxu0 0.0
        %1494 = vmatpush.msra.mxu0 0.0
        %1495 = vmatpush.msra.mxu0 0.0
        %1496 = vmatpush.msra.mxu0 0.0
        %1497 = vmatpush.msra.mxu0 0.0
        %1498 = vmatpush.msra.mxu0 0.0
        %1499 = vmatpush.msra.mxu0 0.0
        %1500 = vmatpush.msra.mxu0 0.0
        %1501 = vmatpush.msra.mxu0 %v1399
        %1502 = vmatpush.msra.mxu0 %v1391
        %1503 = vmatmul.f32.gmra.mxu0 %v1405
        %v1504 = vpop.f32.mrf.mxu0
        %v1505 = vadd.f32 0.0, %v1504
        %1506 = vdwg.mxu0
        %1507 = vmatpush.msra.mxu0 0.0
        %1508 = vmatpush.msra.mxu0 0.0
        %1509 = vmatpush.msra.mxu0 0.0
        %1510 = vmatpush.msra.mxu0 0.0
        %1511 = vmatpush.msra.mxu0 0.0
        %1512 = vmatpush.msra.mxu0 0.0
        %1513 = vmatpush.msra.mxu0 0.0
        %1514 = vmatpush.msra.mxu0 0.0
        %1515 = vmatpush.msra.mxu0 0.0
        %1516 = vmatpush.msra.mxu0 0.0
        %1517 = vmatpush.msra.mxu0 0.0
        %1518 = vmatpush.msra.mxu0 0.0
        %1519 = vmatpush.msra.mxu0 0.0
        %1520 = vmatpush.msra.mxu0 0.0
        %1521 = vmatpush.msra.mxu0 %v1400
        %1522 = vmatpush.msra.mxu0 %v1392
        %1523 = vmatmul.f32.gmra.mxu0 %v1405
        %v1524 = vpop.f32.mrf.mxu0
        %v1525 = vadd.f32 0.0, %v1524
        %1526 = vdwg.mxu0
        %1527 = vmatpush.msra.mxu0 0.0
        %1528 = vmatpush.msra.mxu0 0.0
        %1529 = vmatpush.msra.mxu0 0.0
        %1530 = vmatpush.msra.mxu0 0.0
        %1531 = vmatpush.msra.mxu0 0.0
        %1532 = vmatpush.msra.mxu0 0.0
        %1533 = vmatpush.msra.mxu0 0.0
        %1534 = vmatpush.msra.mxu0 0.0
        %1535 = vmatpush.msra.mxu0 0.0
        %1536 = vmatpush.msra.mxu0 0.0
        %1537 = vmatpush.msra.mxu0 0.0
        %1538 = vmatpush.msra.mxu0 0.0
        %1539 = vmatpush.msra.mxu0 0.0
        %1540 = vmatpush.msra.mxu0 0.0
        %1541 = vmatpush.msra.mxu0 %v1401
        %1542 = vmatpush.msra.mxu0 %v1393
        %1543 = vmatmul.f32.gmra.mxu0 %v1405
        %v1544 = vpop.f32.mrf.mxu0
        %v1545 = vadd.f32 0.0, %v1544
        %1546 = vdwg.mxu0
        %1547 = vmatpush.msra.mxu0 0.0
        %1548 = vmatpush.msra.mxu0 0.0
        %1549 = vmatpush.msra.mxu0 0.0
        %1550 = vmatpush.msra.mxu0 0.0
        %1551 = vmatpush.msra.mxu0 0.0
        %1552 = vmatpush.msra.mxu0 0.0
        %1553 = vmatpush.msra.mxu0 0.0
        %1554 = vmatpush.msra.mxu0 0.0
        %1555 = vmatpush.msra.mxu0 0.0
        %1556 = vmatpush.msra.mxu0 0.0
        %1557 = vmatpush.msra.mxu0 0.0
        %1558 = vmatpush.msra.mxu0 0.0
        %1559 = vmatpush.msra.mxu0 0.0
        %1560 = vmatpush.msra.mxu0 0.0
        %1561 = vmatpush.msra.mxu0 %v1402
        %1562 = vmatpush.msra.mxu0 %v1394
        %1563 = vmatmul.f32.gmra.mxu0 %v1405
        %v1564 = vpop.f32.mrf.mxu0
        %v1565 = vadd.f32 0.0, %v1564
        %1566 = vdwg.mxu0
        %v1575 = vrot.slane %v1445, 7
        %v1576 = vrot.slane %v1465, 6
        %v1577 = vrot.slane %v1485, 5
        %v1578 = vrot.slane %v1505, 4
        %v1579 = vrot.slane %v1525, 3
        %v1580 = vrot.slane %v1545, 2
        %v1581 = vrot.slane %v1565, 1
        %vm1582 = vcmask 1040384
        %v1583 = vsel %vm1582, %v1425, %v1575
        %vm1584 = vcmask 1042434
        %v1585 = vsel %vm1584, %v1576, %v1577
        %vm1586 = vcmask 1041408
        %v1587 = vsel %vm1586, %v1583, %v1585
        %vm1588 = vcmask 1044484
        %v1589 = vsel %vm1588, %v1578, %v1579
        %vm1590 = vcmask 1046534
        %v1591 = vsel %vm1590, %v1580, %v1581
        %vm1592 = vcmask 1045508
        %v1593 = vsel %vm1592, %v1589, %v1591
        %vm1594 = vcmask 1043456
        %v1595 = vsel %vm1594, %v1587, %v1593
        %1597 = vst [vmem:[%s245] sm:$0xff] %v1595
        %s1598 = sand.u32 %s159, 1
        %s1599 = scalar_lea.sflag [#allocation3], %s1598
        %s1600 = sand.u32 %s159, 1
        %s1601 = smul.addr %s1600, 8
        %s1602 = scalar_lea.vmem [#allocation2], %s1601
        // Predicated region
        $region45: #{_lambda_.1} parent=43 // pred_check
          %p1603 = pneg %p169
        $region46: #{_lambda_.1} parent=43 // pred_check_branch
          %1605 = sbr.rel (%p1603) target = $region48
        $region47: #{_lambda_.1} parent=43 // pred_region
          %s1606 = smul.u32 8, %s20
          %1608 = vsyncadd %s1599, 0
          %s1609 = scalar_lea.hbm %s6, %s1606
          %s1611 = sshll.u32 %s1602, 4
          %s1612 = int_to_ptr.vmem [resolvable:$true] %s1611
          %s1613 = sshll.u32 %s1609, 4
          %s1614 = int_to_ptr.hbm [resolvable:$true] %s1613
          %1616 = dma.vmem_to_hbm [thread:$0]  %s1612, 128, %s1614, %s1599
        $region48: #{_lambda_.1} parent=43 // pred_fallthru
          _
      $region44: #{_lambda_.1} parent=5 // pred_fallthru
        _
      %p1617 = scmp.le.s32.totalorder 2, %s15
      // Predicated region
      $region49: #{_lambda_.1} parent=5 // pred_check
        %p1618 = pneg %p1617
      $region50: #{_lambda_.1} parent=5 // pred_check_branch
        %1620 = sbr.rel (%p1618) target = $region52
      $region51: #{_lambda_.1} parent=5 // pred_region
        %s1621 = ssub.s32 %s15, 2
        // Predicated region
        $region53: #{_lambda_.1} parent=51 // pred_check
          %p1622 = pneg %p175
        $region54: #{_lambda_.1} parent=51 // pred_check_branch
          %1624 = sbr.rel (%p1622) target = $region56
        $region55: #{_lambda_.1} parent=51 // pred_region
          %s1625 = sand.u32 %s160, 1
          %s1626 = scalar_lea.sflag [#allocation3], %s1625
          %s1627 = sand.u32 %s160, 1
          %s1628 = smul.addr %s1627, 8
          %s1629 = scalar_lea.vmem [#allocation2], %s1628
          %1631 = dma.done %s1626, 128
        $region56: #{_lambda_.1} parent=51 // pred_fallthru
          _
      $region52: #{_lambda_.1} parent=5 // pred_fallthru
        _
    $region6: #{_lambda_.1} parent=1 // loop_footer
      %s19 = sadd.s32 1, %s15
    $region7: #{_lambda_.1} parent=1 // loop_footer_branch
      %14 = sbr.rel target = $region3
    $region8: #{_lambda_.1} parent=1 // loop_exit
      _
    %1632 = vsyncpa [#allocation3], 1
    %s1633 = scalar_lea.sflag [#allocation3], 1
    %1634 = vsyncpa %s1633, 1

</llo_original>
